<compile_context>
chip_gen: v7x
topology: tpu7x:2x2x1
jax: 0.10.0
libtpu: 0.0.40
codegen_flags: <defaults>
</compile_context>

<pallas_src>
import functools

import jax
import jax.numpy as jnp
import numpy as np
from jax.experimental import pallas as pl
from jax.experimental.pallas import tpu as pltpu

EPS = 1e-5  # torch.nn.InstanceNorm2d default eps


def deconv_block_kernel(p_ref, w_ref, b_ref, o_ref):
    """One sample per grid step.

    p_ref: (1, KKp, L)   im2col patches, KKp = padded kh*kw*Cin, L = Ho*Wo (lanes)
    w_ref: (Cout, KKp)   flattened (and zero-padded) conv-transpose weight
    b_ref: (Cout, 1)     conv-transpose bias
    o_ref: (1, Cout, L)  NCHW-flattened output
    """
    # Single MXU matmul: (Cout, KKp) x (KKp, L) -> (Cout, L), f32 accumulation.
    acc = jnp.dot(w_ref[...], p_ref[0], preferred_element_type=jnp.float32)

    # ConvTranspose2d bias (lane-broadcast).
    acc = acc + b_ref[...]

    # InstanceNorm2d (affine=False): per-channel moments over spatial (lanes),
    # single pass: var = E[x^2] - mean^2  (biased variance, matching PyTorch).
    inv_l = 1.0 / acc.shape[-1]
    s1 = jnp.sum(acc, axis=-1, keepdims=True)            # (Cout, 1)  XLU
    s2 = jnp.sum(acc * acc, axis=-1, keepdims=True)      # (Cout, 1)  XLU
    mean = s1 * inv_l
    var = s2 * inv_l - mean * mean
    normed = (acc - mean) * jax.lax.rsqrt(var + EPS)

    # activation='relu'
    o_ref[...] = jnp.maximum(normed, 0.0)[None].astype(o_ref.dtype)


def _im2col_transposed_conv(x_nhwc, kh, kw, stride, padding, output_padding,
                            h_out, w_out):
    """Build im2col patches (N, kh*kw*Cin, Ho*Wo) for the equivalent stride-1
    conv of the transposed convolution, without materializing the zero-dilated
    tensor. Handles non-square kernels and padding > k-1 via masking."""
    n, h, w, c_in = x_nhwc.shape
    pad_lo_h = kh - 1 - padding
    pad_lo_w = kw - 1 - padding

    oh = jnp.arange(h_out)
    ow = jnp.arange(w_out)
    ki = jnp.arange(kh)
    kj = jnp.arange(kw)

    dh = oh[:, None] + ki[None, :] - pad_lo_h              # (Ho, kh) dilated idx
    dw = ow[:, None] + kj[None, :] - pad_lo_w              # (Wo, kw)
    ih = dh // stride
    iw = dw // stride
    valid_h = (dh >= 0) & (dh % stride == 0) & (ih < h)    # (Ho, kh)
    valid_w = (dw >= 0) & (dw % stride == 0) & (iw < w)    # (Wo, kw)
    ih_c = jnp.clip(ih, 0, h - 1)
    iw_c = jnp.clip(iw, 0, w - 1)

    g = x_nhwc[:, ih_c, :, :]                              # (N, Ho, kh, W, Cin)
    g = g[:, :, :, iw_c, :]                                # (N, Ho, kh, Wo, kw, Cin)
    mask = valid_h[:, :, None, None] & valid_w[None, None, :, :]  # (Ho, kh, Wo, kw)
    g = jnp.where(mask[None, :, :, :, :, None], g, jnp.zeros((), g.dtype))

    # -> (N, kh, kw, Cin, Ho, Wo) -> (N, kh*kw*Cin, Ho*Wo); spatial on lanes.
    g = jnp.transpose(g, (0, 2, 4, 5, 1, 3))
    return g.reshape(n, kh * kw * c_in, h_out * w_out)


def deconv_block(x_nchw, w_t, bias, *, stride=2, padding=1, output_padding=1):
    """Forward of DeconvBlock (batch_norm=True, activation='relu').

    x_nchw: (N, Cin, H, W)
    w_t:    (Cin, Cout, kH, kW)  -- PyTorch ConvTranspose2d weight layout
    bias:   (Cout,)
    returns (N, Cout, H_out, W_out)
    """
    n, c_in, h, w = x_nchw.shape
    c_in_w, c_out, kh, kw = w_t.shape
    assert c_in == c_in_w

    h_out = (h - 1) * stride - 2 * padding + kh + output_padding
    w_out = (w - 1) * stride - 2 * padding + kw + output_padding
    l = h_out * w_out
    kk = kh * kw * c_in
    kk_pad = ((kk + 7) // 8) * 8  # pad contraction dim to sublane multiple

    # Equivalent regular-conv weight: flip spatially, swap in/out -> HWIO,
    # then flatten to (Cout, kh*kw*Cin) matching the im2col row ordering.
    w_flip = jnp.transpose(w_t[:, :, ::-1, ::-1], (2, 3, 0, 1))       # (kh,kw,Cin,Cout)
    w_mat = jnp.transpose(w_flip, (3, 0, 1, 2)).reshape(c_out, kk)    # (Cout, KK)
    w_mat = jnp.pad(w_mat, ((0, 0), (0, kk_pad - kk))).astype(jnp.float32)

    # im2col patches with the spatial axis last (lane-dense).
    x_nhwc = jnp.transpose(x_nchw, (0, 2, 3, 1))
    patches = _im2col_transposed_conv(x_nhwc, kh, kw, stride, padding,
                                      output_padding, h_out, w_out)
    patches = jnp.pad(patches, ((0, 0), (0, kk_pad - kk), (0, 0)))
    patches = patches.astype(jnp.float32)

    bias2d = bias.reshape(c_out, 1).astype(jnp.float32)

    out_flat = pl.pallas_call(
        deconv_block_kernel,
        out_shape=jax.ShapeDtypeStruct((n, c_out, l), jnp.float32),
        grid=(n,),
        in_specs=[
            pl.BlockSpec((1, kk_pad, l), lambda i: (i, 0, 0)),
            pl.BlockSpec((c_out, kk_pad), lambda i: (0, 0)),
            pl.BlockSpec((c_out, 1), lambda i: (0, 0)),
        ],
        out_specs=pl.BlockSpec((1, c_out, l), lambda i: (i, 0, 0)),
        compiler_params=pltpu.CompilerParams(
            dimension_semantics=("parallel",)),
    )(patches, w_mat, bias2d)

    # NCHW output: just a reshape, no transpose pass.
    return out_flat.reshape(n, c_out, h_out, w_out)


def reference_forward(x_nchw, w_t, bias, *, stride=2, padding=1, output_padding=1):
    """Pure-JAX reference for validation (same semantics as the PyTorch module)."""
    _, _, kh, kw = w_t.shape
    x_nhwc = jnp.transpose(x_nchw, (0, 2, 3, 1))
    w_conv = jnp.transpose(w_t[:, :, ::-1, ::-1], (2, 3, 0, 1))
    pad_lo_h = kh - 1 - padding
    pad_hi_h = kh - 1 - padding + output_padding
    pad_lo_w = kw - 1 - padding
    pad_hi_w = kw - 1 - padding + output_padding
    y = jax.lax.conv_general_dilated(
        x_nhwc, w_conv, window_strides=(1, 1),
        padding=[(pad_lo_h, pad_hi_h), (pad_lo_w, pad_hi_w)],
        lhs_dilation=(stride, stride),
        dimension_numbers=("NHWC", "HWIO", "NHWC"))
    y = y + bias[None, None, None, :]
    mean = jnp.mean(y, axis=(1, 2), keepdims=True)
    var = jnp.mean((y - mean) ** 2, axis=(1, 2), keepdims=True)
    y = (y - mean) * jax.lax.rsqrt(var + EPS)
    y = jnp.maximum(y, 0.0)
    return jnp.transpose(y, (0, 3, 1, 2))


if __name__ == "__main__":
    key = jax.random.PRNGKey(0)
    kx, kw_, kb = jax.random.split(key, 3)

    N, C_IN, H, W = 2, 4, 16, 16
    C_OUT, K = 8, 3

    x = jax.random.normal(kx, (N, C_IN, H, W), jnp.float32)
    # Deterministic parameter init (uniform, PyTorch-like fan-in bound).
    bound = 1.0 / float(np.sqrt(C_IN * K * K))
    w_t = jax.random.uniform(kw_, (C_IN, C_OUT, K, K), jnp.float32, -bound, bound)
    bias = jax.random.uniform(kb, (C_OUT,), jnp.float32, -bound, bound)

    out = deconv_block(x, w_t, bias)
    out = jax.block_until_ready(out)
    assert out.shape == (N, C_OUT, 2 * H, 2 * W), out.shape

    ref = reference_forward(x, w_t, bias)
    np.testing.assert_allclose(np.asarray(out), np.asarray(ref),
                               rtol=1e-4, atol=1e-4)

    print("KERNEL_OK")
</pallas_src>

<mosaic_0001>
module attributes {stable_mosaic.version = 11 : i64} {
  func.func @deconv_block_kernel(%arg0: i32, %arg1: memref<1x40x1024xf32, #tpu.memory_space<vmem>>, %arg2: memref<8x40xf32, #tpu.memory_space<vmem>>, %arg3: memref<8x1xf32, #tpu.memory_space<vmem>>, %arg4: memref<1x8x1024xf32, #tpu.memory_space<vmem>>) attributes {dimension_semantics = [#tpu.dimension_semantics<parallel>], iteration_bounds = array<i64: 2>, scalar_prefetch = 0 : i64, scratch_operands = 0 : i64, tpu.core_type = #tpu.core_type<tc>, window_params = [{transform_indices = @transform_0, window_bounds = array<i64: 1, 40, 1024>}, {pipeline_mode = #tpu.pipeline_mode<synchronous>, transform_indices = @transform_1, window_bounds = array<i64: 8, 40>}, {pipeline_mode = #tpu.pipeline_mode<synchronous>, transform_indices = @transform_2, window_bounds = array<i64: 8, 1>}, {transform_indices = @transform_3, window_bounds = array<i64: 1, 8, 1024>}]} {
    %c0 = arith.constant 0 : index
    %c0_0 = arith.constant 0 : index
    %0 = vector.load %arg2[%c0, %c0_0] : memref<8x40xf32, #tpu.memory_space<vmem>>, vector<8x40xf32>
    %c0_1 = arith.constant 0 : index
    %c0_2 = arith.constant 0 : index
    %c0_3 = arith.constant 0 : index
    %1 = vector.load %arg1[%c0_1, %c0_2, %c0_3] : memref<1x40x1024xf32, #tpu.memory_space<vmem>>, vector<1x40x1024xf32>
    %2 = vector.shape_cast %1 : vector<1x40x1024xf32> to vector<40x1024xf32>
    %cst = arith.constant dense<0.000000e+00> : vector<8x1024xf32>
    %3 = tpu.matmul %0, %2, %cst {dimension_numbers = #tpu.dot_dimension_numbers<[1], [0], [0], [1], [0, 0, 1, 1], [], []>} : vector<8x40xf32>, vector<40x1024xf32>, vector<8x1024xf32> -> vector<8x1024xf32>
    %c0_4 = arith.constant 0 : index
    %c0_5 = arith.constant 0 : index
    %4 = vector.load %arg3[%c0_4, %c0_5] : memref<8x1xf32, #tpu.memory_space<vmem>>, vector<8x1xf32>
    %5 = vector.broadcast %4 : vector<8x1xf32> to vector<8x1024xf32>
    %6 = arith.addf %3, %5 : vector<8x1024xf32>
    %cst_6 = arith.constant dense<0.000000e+00> : vector<8xf32>
    %7 = vector.multi_reduction <add>, %6, %cst_6 [1] : vector<8x1024xf32> to vector<8xf32>
    %8 = vector.shape_cast %7 : vector<8xf32> to vector<8x1xf32>
    %9 = arith.mulf %6, %6 : vector<8x1024xf32>
    %cst_7 = arith.constant dense<0.000000e+00> : vector<8xf32>
    %10 = vector.multi_reduction <add>, %9, %cst_7 [1] : vector<8x1024xf32> to vector<8xf32>
    %11 = vector.shape_cast %10 : vector<8xf32> to vector<8x1xf32>
    %cst_8 = arith.constant 9.765625E-4 : f32
    %12 = vector.broadcast %cst_8 : f32 to vector<8x1xf32>
    %13 = arith.mulf %8, %12 : vector<8x1xf32>
    %cst_9 = arith.constant 9.765625E-4 : f32
    %14 = vector.broadcast %cst_9 : f32 to vector<8x1xf32>
    %15 = arith.mulf %11, %14 : vector<8x1xf32>
    %16 = arith.mulf %13, %13 : vector<8x1xf32>
    %17 = arith.subf %15, %16 : vector<8x1xf32>
    %18 = vector.broadcast %13 : vector<8x1xf32> to vector<8x1024xf32>
    %19 = arith.subf %6, %18 : vector<8x1024xf32>
    %cst_10 = arith.constant 9.99999974E-6 : f32
    %20 = vector.broadcast %cst_10 : f32 to vector<8x1xf32>
    %21 = arith.addf %17, %20 : vector<8x1xf32>
    %22 = math.rsqrt %21 : vector<8x1xf32>
    %23 = vector.broadcast %22 : vector<8x1xf32> to vector<8x1024xf32>
    %24 = arith.mulf %19, %23 : vector<8x1024xf32>
    %cst_11 = arith.constant 0.000000e+00 : f32
    %25 = vector.broadcast %cst_11 : f32 to vector<8x1024xf32>
    %26 = arith.maximumf %24, %25 : vector<8x1024xf32>
    %27 = vector.shape_cast %26 : vector<8x1024xf32> to vector<1x8x1024xf32>
    %c0_12 = arith.constant 0 : index
    %c0_13 = arith.constant 0 : index
    %c0_14 = arith.constant 0 : index
    %28 = vector.load %arg4[%c0_12, %c0_13, %c0_14] : memref<1x8x1024xf32, #tpu.memory_space<vmem>>, vector<1x8x1024xf32>
    tpu.vector_store %arg4[%c0_12, %c0_13, %c0_14], %27 {strides = array<i32>} : memref<1x8x1024xf32, #tpu.memory_space<vmem>>, vector<1x8x1024xf32>,
    return
  }
  func.func @transform_0(%arg0: i32) -> (i32, i32, i32) {
    %c0_i32 = arith.constant 0 : i32
    %c0_i32_0 = arith.constant 0 : i32
    %c0_i32_1 = arith.constant 0 : i32
    return %arg0, %c0_i32, %c0_i32_0 : i32, i32, i32
  }
  func.func @transform_1(%arg0: i32) -> (i32, i32) {
    %c0_i32 = arith.constant 0 : i32
    %c0_i32_0 = arith.constant 0 : i32
    %c0_i32_1 = arith.constant 0 : i32
    return %c0_i32, %c0_i32_0 : i32, i32
  }
  func.func @transform_2(%arg0: i32) -> (i32, i32) {
    %c0_i32 = arith.constant 0 : i32
    %c0_i32_0 = arith.constant 0 : i32
    %c0_i32_1 = arith.constant 0 : i32
    return %c0_i32, %c0_i32_0 : i32, i32
  }
  func.func @transform_3(%arg0: i32) -> (i32, i32, i32) {
    %c0_i32 = arith.constant 0 : i32
    %c0_i32_0 = arith.constant 0 : i32
    %c0_i32_1 = arith.constant 0 : i32
    return %arg0, %c0_i32, %c0_i32_0 : i32, i32, i32
  }
}

</mosaic_0001>

<llo_original>
// kernel: tpu_custom_call.1
$region0: #{tpu_custom_call.1}
  #allocation0 [shape = 'u32[]', space=smem, size = 0x4, offset = 0x4, fixed_abs, tag = 'smem constant byte address 0x4 - core index']
  #allocation1 [shape = 'u32[144,128]{1,0:T(1,128)}', space=vmem, size = 0x12000, scoped, tag = 'internal scratch']
  %s0 = inlined_call_operand.hbm [shape: f32[2,40,1024], index: 0, kind: input, shape index: {}]
  %s1 = inlined_call_operand.vmem [shape: f32[8,40], index: 1, kind: input, shape index: {}]
  %s2 = inlined_call_operand.vmem [shape: f32[8,1], index: 2, kind: input, shape index: {}]
  %s3 = inlined_call_operand.hbm [shape: f32[2,8,1024], index: 3, kind: output, shape index: {}]
  %s4 = sld [smem:[#allocation0]]
  $region49: #{tpu_custom_call.1} parent=0
    _
  %s6 = ssub.s32 1, %s4
  %s7 = scalar_select 0, %s6, %s4
  $region1: #{tpu_custom_call.1} parent=0
    #allocation2 [shape = 'u8[327680]{0}', space=vmem, size = 0x50000, scoped, tag = 'input window, operand 0']
    #allocation3 [shape = 's32[2]{0}', space=sflag, size = 0x8, scoped, tag = 'scoped memory for tpu_custom_call.1']
    #allocation4 [shape = 's32[2]{0}', space=sflag, size = 0x8, scoped, tag = 'scoped memory for tpu_custom_call.1']
    #allocation5 [shape = 'u8[65536]{0}', space=vmem, size = 0x10000, scoped, tag = 'output window, operand 0']
    %8 = vsyncpa [#allocation3], 0
    %s9 = scalar_lea.sflag [#allocation3], 1
    %10 = vsyncpa %s9, 0
    %11 = vsyncpa [#allocation4], 0
    %s12 = scalar_lea.sflag [#allocation4], 1
    %13 = vsyncpa %s12, 0
    loop: start=0, step=1, limit=4
    $region2: #{tpu_custom_call.1} parent=1 // loop_pre_header
      _
    $region3: #{tpu_custom_call.1} parent=1 // loop_header
      %s15 = sphi 0, %s19
      %p16 = scmp.ge.s32.totalorder %s15, 4
      %s25 = sphi 0, %s27
      %s28 = sphi 0, %s25
      %s29 = sphi 0, %s28
      %s45 = sphi 0, %s29
      %s49 = sphi 0, %s49
      %s51 = sphi 0, %s49
      %s52 = sphi 0, %s51
      %s66 = sphi 0, %s52
      %s70 = sphi 0, %s70
      %s72 = sphi 0, %s70
      %s73 = sphi 0, %s72
      %s87 = sphi 0, %s73
      %s93 = sphi 0, %s95
      %s96 = sphi 0, %s93
      %s97 = sphi 0, %s96
      %s113 = sphi 0, %s97
    $region4: #{tpu_custom_call.1} parent=1 // loop_header_branch
      %18 = sbr.rel (%p16) target = $region8
    $region5: #{tpu_custom_call.1} parent=1 // loop_body
      %s20 = ssub.s32 %s15, 1
      %s21 = ssub.s32 %s15, 2
      %s22 = sadd.s32 %s15, 1
      %s23 = ssub.s32 %s15, %s22
      %p24 = scmp.eq.s32.totalorder %s23, 0
      %s26 = sadd.s32 %s25, 1
      %s27 = scalar_select %p24, %s25, %s26
      %p30 = pneg %p24
      %p31 = scmp.eq.s32.totalorder %s15, 1
      %p32 = por %p30, %p31
      %p33 = scmp.ne.s32.totalorder %s25, %s28
      %p34 = scmp.eq.s32.totalorder %s15, 0
      %p35 = por %p33, %p34
      %p36 = scmp.ne.s32.totalorder %s25, %s28
      %p37 = scmp.eq.s32.totalorder %s20, 1
      %p38 = por %p36, %p37
      %p39 = scmp.ne.s32.totalorder %s28, %s29
      %p40 = scmp.eq.s32.totalorder %s20, 0
      %p41 = por %p39, %p40
      %p42 = scmp.ne.s32.totalorder %s28, %s29
      %p43 = scmp.eq.s32.totalorder %s21, 1
      %p44 = por %p42, %p43
      %p46 = scmp.ne.s32.totalorder %s29, %s45
      %p47 = scmp.eq.s32.totalorder %s21, 0
      %p48 = por %p46, %p47
      %s50 = sadd.s32 %s49, 1
      %p53 = scmp.eq.s32.totalorder %s15, 1
      %p54 = scmp.ne.s32.totalorder %s49, %s51
      %p55 = scmp.eq.s32.totalorder %s15, 0
      %p56 = por %p54, %p55
      %p57 = scmp.ne.s32.totalorder %s49, %s51
      %p58 = scmp.eq.s32.totalorder %s20, 1
      %p59 = por %p57, %p58
      %p60 = scmp.ne.s32.totalorder %s51, %s52
      %p61 = scmp.eq.s32.totalorder %s20, 0
      %p62 = por %p60, %p61
      %p63 = scmp.ne.s32.totalorder %s51, %s52
      %p64 = scmp.eq.s32.totalorder %s21, 1
      %p65 = por %p63, %p64
      %p67 = scmp.ne.s32.totalorder %s52, %s66
      %p68 = scmp.eq.s32.totalorder %s21, 0
      %p69 = por %p67, %p68
      %s71 = sadd.s32 %s70, 1
      %p74 = scmp.eq.s32.totalorder %s15, 1
      %p75 = scmp.ne.s32.totalorder %s70, %s72
      %p76 = scmp.eq.s32.totalorder %s15, 0
      %p77 = por %p75, %p76
      %p78 = scmp.ne.s32.totalorder %s70, %s72
      %p79 = scmp.eq.s32.totalorder %s20, 1
      %p80 = por %p78, %p79
      %p81 = scmp.ne.s32.totalorder %s72, %s73
      %p82 = scmp.eq.s32.totalorder %s20, 0
      %p83 = por %p81, %p82
      %p84 = scmp.ne.s32.totalorder %s72, %s73
      %p85 = scmp.eq.s32.totalorder %s21, 1
      %p86 = por %p84, %p85
      %p88 = scmp.ne.s32.totalorder %s73, %s87
      %p89 = scmp.eq.s32.totalorder %s21, 0
      %p90 = por %p88, %p89
      %s91 = ssub.s32 %s15, %s22
      %p92 = scmp.eq.s32.totalorder %s91, 0
      %s94 = sadd.s32 %s93, 1
      %s95 = scalar_select %p92, %s93, %s94
      %p98 = pneg %p92
      %p99 = scmp.eq.s32.totalorder %s15, 1
      %p100 = por %p98, %p99
      %p101 = scmp.ne.s32.totalorder %s93, %s96
      %p102 = scmp.eq.s32.totalorder %s15, 0
      %p103 = por %p101, %p102
      %p104 = scmp.ne.s32.totalorder %s93, %s96
      %p105 = scmp.eq.s32.totalorder %s20, 1
      %p106 = por %p104, %p105
      %p107 = scmp.ne.s32.totalorder %s96, %s97
      %p108 = scmp.eq.s32.totalorder %s20, 0
      %p109 = por %p107, %p108
      %p110 = scmp.ne.s32.totalorder %s96, %s97
      %p111 = scmp.eq.s32.totalorder %s21, 1
      %p112 = por %p110, %p111
      %p114 = scmp.ne.s32.totalorder %s97, %s113
      %p115 = scmp.eq.s32.totalorder %s21, 0
      %p116 = por %p114, %p115
      %p117 = scmp.le.s32.totalorder 1, %s15
      %p118 = scmp.lt.s32.totalorder %s15, 3
      %p119 = pnand %p117, %p118
      %p120 = pneg %p119
      // Predicated region
      $region9: #{tpu_custom_call.1} parent=5 // pred_check
        _
      $region10: #{tpu_custom_call.1} parent=5 // pred_check_branch
        %122 = sbr.rel (%p119) target = $region12
      $region11: #{tpu_custom_call.1} parent=5 // pred_region
        %s123 = ssub.s32 %s15, 1
        // Predicated region
        $region13: #{tpu_custom_call.1} parent=11 // pred_check
          %p124 = pneg %p62
        $region14: #{tpu_custom_call.1} parent=11 // pred_check_branch
          %126 = sbr.rel (%p124) target = $region16
        $region15: #{tpu_custom_call.1} parent=11 // pred_region
          _
        $region16: #{tpu_custom_call.1} parent=11 // pred_fallthru
          _
        // Predicated region
        $region17: #{tpu_custom_call.1} parent=11 // pred_check
          %p127 = pneg %p83
        $region18: #{tpu_custom_call.1} parent=11 // pred_check_branch
          %129 = sbr.rel (%p127) target = $region20
        $region19: #{tpu_custom_call.1} parent=11 // pred_region
          _
        $region20: #{tpu_custom_call.1} parent=11 // pred_fallthru
          _
      $region12: #{tpu_custom_call.1} parent=5 // pred_fallthru
        _
      %p130 = scmp.lt.s32.totalorder %s15, 2
      // Predicated region
      $region21: #{tpu_custom_call.1} parent=5 // pred_check
        %p131 = pneg %p130
      $region22: #{tpu_custom_call.1} parent=5 // pred_check_branch
        %133 = sbr.rel (%p131) target = $region24
      $region23: #{tpu_custom_call.1} parent=5 // pred_region
        // Predicated region
        $region25: #{tpu_custom_call.1} parent=23 // pred_check
          %p134 = pneg %p35
        $region26: #{tpu_custom_call.1} parent=23 // pred_check_branch
          %136 = sbr.rel (%p134) target = $region28
        $region27: #{tpu_custom_call.1} parent=23 // pred_region
          %s137 = sand.u32 %s25, 1
          %s138 = scalar_lea.sflag [#allocation3], %s137
          %s139 = sand.u32 %s25, 1
          %s140 = smul.addr %s139, 320
          %s141 = scalar_lea.vmem [#allocation2], %s140
          %s143 = ssub.s32 5120, 5120
          %144 = vsyncadd %s138, %s143
          %s145 = smul.addr %s15, 40
          %s146 = smul.addr %s145, 128
          %s147 = scalar_lea.hbm %s0, %s146
          %s148 = sshll.u32 %s141, 4
          %s149 = int_to_ptr.vmem [resolvable:$true] %s148
          %154 = dma.hbm_to_vmem [thread:$0]  %s147, 5120, %s149, %s138, 1024, 1024, 64
        $region28: #{tpu_custom_call.1} parent=23 // pred_fallthru
          _
      $region24: #{tpu_custom_call.1} parent=5 // pred_fallthru
        _
      %p155 = scmp.le.s32.totalorder 1, %s15
      %p156 = scmp.lt.s32.totalorder %s15, 3
      %p157 = pnand %p155, %p156
      %p158 = pneg %p157
      // Predicated region
      $region29: #{tpu_custom_call.1} parent=5 // pred_check
        _
      $region30: #{tpu_custom_call.1} parent=5 // pred_check_branch
        %160 = sbr.rel (%p157) target = $region32
      $region31: #{tpu_custom_call.1} parent=5 // pred_region
        %s161 = ssub.s32 %s15, 1
        %s162 = sand.u32 %s28, 1
        %s163 = scalar_lea.sflag [#allocation3], %s162
        %s164 = sand.u32 %s28, 1
        %s165 = smul.addr %s164, 320
        %s166 = scalar_lea.vmem [#allocation2], %s165
        // Predicated region
        $region33: #{tpu_custom_call.1} parent=31 // pred_check
          %p167 = pneg %p41
        $region34: #{tpu_custom_call.1} parent=31 // pred_check_branch
          %169 = sbr.rel (%p167) target = $region36
        $region35: #{tpu_custom_call.1} parent=31 // pred_region
          %170 = dma.done %s163, 5120
        $region36: #{tpu_custom_call.1} parent=31 // pred_fallthru
          _
        %s171 = sand.u32 %s28, 1
        %s172 = scalar_lea.sflag [#allocation3], %s171
        %s173 = sand.u32 %s28, 1
        %s174 = smul.addr %s173, 320
        %s175 = scalar_lea.vmem [#allocation2], %s174
        %p176 = pneg %p41
        %p177 = pneg %p38
        %p178 = pneg %p62
        %p179 = pneg %p59
        %p180 = pneg %p83
        %p181 = pneg %p80
        %p182 = pneg %p109
        %p183 = pneg %p106
        %s184 = sand.u32 %s96, 1
        %s185 = scalar_lea.sflag [#allocation4], %s184
        %s186 = sand.u32 %s96, 1
        %s187 = smul.addr %s186, 64
        %s188 = scalar_lea.vmem [#allocation5], %s187
        %v189 = vld [vmem:[%s1] sm:$0xff]
        %v190 = vld [vmem:[%s166] sm:$0xff]
        %v191 = vld [vmem:[%s166 + $0x8] sm:$0xff]
        %v192 = vld [vmem:[%s166 + $0x10] sm:$0xff]
        %v193 = vld [vmem:[%s166 + $0x18] sm:$0xff]
        %v194 = vld [vmem:[%s166 + $0x20] sm:$0xff]
        %v195 = vld [vmem:[%s166 + $0x28] sm:$0xff]
        %v196 = vld [vmem:[%s166 + $0x30] sm:$0xff]
        %v197 = vld [vmem:[%s166 + $0x38] sm:$0xff]
        %v198 = vld [vmem:[%s166 + $0x40] sm:$0xff]
        %v199 = vld [vmem:[%s166 + $0x48] sm:$0xff]
        %v200 = vld [vmem:[%s166 + $0x50] sm:$0xff]
        %v201 = vld [vmem:[%s166 + $0x58] sm:$0xff]
        %v202 = vld [vmem:[%s166 + $0x60] sm:$0xff]
        %v203 = vld [vmem:[%s166 + $0x68] sm:$0xff]
        %v204 = vld [vmem:[%s166 + $0x70] sm:$0xff]
        %v205 = vld [vmem:[%s166 + $0x78] sm:$0xff]
        %v206 = vld [vmem:[%s166 + $0x80] sm:$0xff]
        %v207 = vld [vmem:[%s166 + $0x88] sm:$0xff]
        %v208 = vld [vmem:[%s166 + $0x90] sm:$0xff]
        %v209 = vld [vmem:[%s166 + $0x98] sm:$0xff]
        %v210 = vld [vmem:[%s166 + $0xa0] sm:$0xff]
        %v211 = vld [vmem:[%s166 + $0xa8] sm:$0xff]
        %v212 = vld [vmem:[%s166 + $0xb0] sm:$0xff]
        %v213 = vld [vmem:[%s166 + $0xb8] sm:$0xff]
        %v214 = vld [vmem:[%s166 + $0xc0] sm:$0xff]
        %v215 = vld [vmem:[%s166 + $0xc8] sm:$0xff]
        %v216 = vld [vmem:[%s166 + $0xd0] sm:$0xff]
        %v217 = vld [vmem:[%s166 + $0xd8] sm:$0xff]
        %v218 = vld [vmem:[%s166 + $0xe0] sm:$0xff]
        %v219 = vld [vmem:[%s166 + $0xe8] sm:$0xff]
        %v220 = vld [vmem:[%s166 + $0xf0] sm:$0xff]
        %v221 = vld [vmem:[%s166 + $0xf8] sm:$0xff]
        %v222 = vld [vmem:[%s166 + $0x100] sm:$0xff]
        %v223 = vld [vmem:[%s166 + $0x108] sm:$0xff]
        %v224 = vld [vmem:[%s166 + $0x110] sm:$0xff]
        %v225 = vld [vmem:[%s166 + $0x118] sm:$0xff]
        %v226 = vld [vmem:[%s166 + $0x120] sm:$0xff]
        %v227 = vld [vmem:[%s166 + $0x128] sm:$0xff]
        %v228 = vld [vmem:[%s166 + $0x130] sm:$0xff]
        %v229 = vld [vmem:[%s166 + $0x138] sm:$0xff]
        %v230 = vld [vmem:[%s2] sm:$0xff]
        %232 = vset.pattern.permute.xlu0 0
        %233 = vperm.xlu0 %232, %v230
        %v234 = vpop.permute.xlu0 %233
        %vm236 = vcmask 326656
        %v238 = vsel %vm236, %v189, 0
        %240 = vmatprep.subr.mxu0 %v191
        %241 = vmatpush1.msra.mxu0 %v190
        %242 = vmatprep.subr.mxu0 %v199
        %243 = vmatpush1.msra.mxu0 %v198
        %244 = vmatprep.subr.mxu0 %v207
        %245 = vmatpush1.msra.mxu0 %v206
        %246 = vmatprep.subr.mxu0 %v215
        %247 = vmatpush1.msra.mxu0 %v214
        %248 = vmatprep.subr.mxu0 %v223
        %249 = vmatpush1.msra.mxu0 %v222
        %250 = vmatprep.subr.mxu0 0.0
        %251 = vmatpush1.msra.mxu0 0.0
        %252 = vmatprep.subr.mxu0 0.0
        %253 = vmatpush1.msra.mxu0 0.0
        %254 = vmatprep.subr.mxu0 0.0
        %255 = vmatpush1.msra.mxu0 0.0
        %256 = vmatprep.subr.mxu0 0.0
        %257 = vmatpush1.msra.mxu0 0.0
        %258 = vmatprep.subr.mxu0 0.0
        %259 = vmatpush1.msra.mxu0 0.0
        %260 = vmatprep.subr.mxu0 0.0
        %261 = vmatpush1.msra.mxu0 0.0
        %262 = vmatprep.subr.mxu0 0.0
        %263 = vmatpush1.msra.mxu0 0.0
        %264 = vmatprep.subr.mxu0 0.0
        %265 = vmatpush1.msra.mxu0 0.0
        %266 = vmatprep.subr.mxu0 0.0
        %267 = vmatpush1.msra.mxu0 0.0
        %268 = vmatprep.subr.mxu0 0.0
        %269 = vmatpush1.msra.mxu0 0.0
        %270 = vmatprep.subr.mxu0 0.0
        %271 = vmatpush1.msra.mxu0 0.0
        %272 = vmatprep.subr.mxu0 0.0
        %273 = vmatpush1.msra.mxu0 0.0
        %274 = vmatprep.subr.mxu0 0.0
        %275 = vmatpush1.msra.mxu0 0.0
        %276 = vmatprep.subr.mxu0 0.0
        %277 = vmatpush1.msra.mxu0 0.0
        %278 = vmatprep.subr.mxu0 0.0
        %279 = vmatpush1.msra.mxu0 0.0
        %280 = vmatprep.subr.mxu0 0.0
        %281 = vmatpush1.msra.mxu0 0.0
        %282 = vmatprep.subr.mxu0 0.0
        %283 = vmatpush1.msra.mxu0 0.0
        %284 = vmatprep.subr.mxu0 0.0
        %285 = vmatpush1.msra.mxu0 0.0
        %286 = vmatprep.subr.mxu0 0.0
        %287 = vmatpush1.msra.mxu0 0.0
        %288 = vmatprep.subr.mxu0 0.0
        %289 = vmatpush1.msra.mxu0 0.0
        %290 = vmatprep.subr.mxu0 0.0
        %291 = vmatpush1.msra.mxu0 0.0
        %292 = vmatprep.subr.mxu0 0.0
        %293 = vmatpush1.msra.mxu0 0.0
        %294 = vmatprep.subr.mxu0 0.0
        %295 = vmatpush1.msra.mxu0 0.0
        %296 = vmatprep.subr.mxu0 0.0
        %297 = vmatpush1.msra.mxu0 0.0
        %298 = vmatprep.subr.mxu0 0.0
        %299 = vmatpush1.msra.mxu0 0.0
        %300 = vmatprep.subr.mxu0 0.0
        %301 = vmatpush1.msra.mxu0 0.0
        %302 = vmatprep.subr.mxu0 0.0
        %303 = vmatpush1.msra.mxu0 0.0
        %304 = vmatprep.mubr.f32.mxu0 0.0
        %305 = vmatmul.mubr.f32.gmra.mrb[0].mxu0 %v238
        %v306 = vpop.f32.mrb[0].mxu0
        %v307 = vadd.f32 %v234, %v306
        %v308 = vpop.f32.mrb[0].mxu0
        %v309 = vadd.f32 %v234, %v308
        %310 = vdwg.mxu0
        %311 = vmatprep.subr.mxu0 %v193
        %312 = vmatpush1.msra.mxu0 %v192
        %313 = vmatprep.subr.mxu0 %v201
        %314 = vmatpush1.msra.mxu0 %v200
        %315 = vmatprep.subr.mxu0 %v209
        %316 = vmatpush1.msra.mxu0 %v208
        %317 = vmatprep.subr.mxu0 %v217
        %318 = vmatpush1.msra.mxu0 %v216
        %319 = vmatprep.subr.mxu0 %v225
        %320 = vmatpush1.msra.mxu0 %v224
        %321 = vmatprep.subr.mxu0 0.0
        %322 = vmatpush1.msra.mxu0 0.0
        %323 = vmatprep.subr.mxu0 0.0
        %324 = vmatpush1.msra.mxu0 0.0
        %325 = vmatprep.subr.mxu0 0.0
        %326 = vmatpush1.msra.mxu0 0.0
        %327 = vmatprep.subr.mxu0 0.0
        %328 = vmatpush1.msra.mxu0 0.0
        %329 = vmatprep.subr.mxu0 0.0
        %330 = vmatpush1.msra.mxu0 0.0
        %331 = vmatprep.subr.mxu0 0.0
        %332 = vmatpush1.msra.mxu0 0.0
        %333 = vmatprep.subr.mxu0 0.0
        %334 = vmatpush1.msra.mxu0 0.0
        %335 = vmatprep.subr.mxu0 0.0
        %336 = vmatpush1.msra.mxu0 0.0
        %337 = vmatprep.subr.mxu0 0.0
        %338 = vmatpush1.msra.mxu0 0.0
        %339 = vmatprep.subr.mxu0 0.0
        %340 = vmatpush1.msra.mxu0 0.0
        %341 = vmatprep.subr.mxu0 0.0
        %342 = vmatpush1.msra.mxu0 0.0
        %343 = vmatprep.subr.mxu0 0.0
        %344 = vmatpush1.msra.mxu0 0.0
        %345 = vmatprep.subr.mxu0 0.0
        %346 = vmatpush1.msra.mxu0 0.0
        %347 = vmatprep.subr.mxu0 0.0
        %348 = vmatpush1.msra.mxu0 0.0
        %349 = vmatprep.subr.mxu0 0.0
        %350 = vmatpush1.msra.mxu0 0.0
        %351 = vmatprep.subr.mxu0 0.0
        %352 = vmatpush1.msra.mxu0 0.0
        %353 = vmatprep.subr.mxu0 0.0
        %354 = vmatpush1.msra.mxu0 0.0
        %355 = vmatprep.subr.mxu0 0.0
        %356 = vmatpush1.msra.mxu0 0.0
        %357 = vmatprep.subr.mxu0 0.0
        %358 = vmatpush1.msra.mxu0 0.0
        %359 = vmatprep.subr.mxu0 0.0
        %360 = vmatpush1.msra.mxu0 0.0
        %361 = vmatprep.subr.mxu0 0.0
        %362 = vmatpush1.msra.mxu0 0.0
        %363 = vmatprep.subr.mxu0 0.0
        %364 = vmatpush1.msra.mxu0 0.0
        %365 = vmatprep.subr.mxu0 0.0
        %366 = vmatpush1.msra.mxu0 0.0
        %367 = vmatprep.subr.mxu0 0.0
        %368 = vmatpush1.msra.mxu0 0.0
        %369 = vmatprep.subr.mxu0 0.0
        %370 = vmatpush1.msra.mxu0 0.0
        %371 = vmatprep.subr.mxu0 0.0
        %372 = vmatpush1.msra.mxu0 0.0
        %373 = vmatprep.subr.mxu0 0.0
        %374 = vmatpush1.msra.mxu0 0.0
        %375 = vmatprep.mubr.f32.mxu0 0.0
        %376 = vmatmul.mubr.f32.gmra.mrb[0].mxu0 %v238
        %v377 = vpop.f32.mrb[0].mxu0
        %v378 = vadd.f32 %v234, %v377
        %v379 = vpop.f32.mrb[0].mxu0
        %v380 = vadd.f32 %v234, %v379
        %381 = vdwg.mxu0
        %382 = vmatprep.subr.mxu0 %v195
        %383 = vmatpush1.msra.mxu0 %v194
        %384 = vmatprep.subr.mxu0 %v203
        %385 = vmatpush1.msra.mxu0 %v202
        %386 = vmatprep.subr.mxu0 %v211
        %387 = vmatpush1.msra.mxu0 %v210
        %388 = vmatprep.subr.mxu0 %v219
        %389 = vmatpush1.msra.mxu0 %v218
        %390 = vmatprep.subr.mxu0 %v227
        %391 = vmatpush1.msra.mxu0 %v226
        %392 = vmatprep.subr.mxu0 0.0
        %393 = vmatpush1.msra.mxu0 0.0
        %394 = vmatprep.subr.mxu0 0.0
        %395 = vmatpush1.msra.mxu0 0.0
        %396 = vmatprep.subr.mxu0 0.0
        %397 = vmatpush1.msra.mxu0 0.0
        %398 = vmatprep.subr.mxu0 0.0
        %399 = vmatpush1.msra.mxu0 0.0
        %400 = vmatprep.subr.mxu0 0.0
        %401 = vmatpush1.msra.mxu0 0.0
        %402 = vmatprep.subr.mxu0 0.0
        %403 = vmatpush1.msra.mxu0 0.0
        %404 = vmatprep.subr.mxu0 0.0
        %405 = vmatpush1.msra.mxu0 0.0
        %406 = vmatprep.subr.mxu0 0.0
        %407 = vmatpush1.msra.mxu0 0.0
        %408 = vmatprep.subr.mxu0 0.0
        %409 = vmatpush1.msra.mxu0 0.0
        %410 = vmatprep.subr.mxu0 0.0
        %411 = vmatpush1.msra.mxu0 0.0
        %412 = vmatprep.subr.mxu0 0.0
        %413 = vmatpush1.msra.mxu0 0.0
        %414 = vmatprep.subr.mxu0 0.0
        %415 = vmatpush1.msra.mxu0 0.0
        %416 = vmatprep.subr.mxu0 0.0
        %417 = vmatpush1.msra.mxu0 0.0
        %418 = vmatprep.subr.mxu0 0.0
        %419 = vmatpush1.msra.mxu0 0.0
        %420 = vmatprep.subr.mxu0 0.0
        %421 = vmatpush1.msra.mxu0 0.0
        %422 = vmatprep.subr.mxu0 0.0
        %423 = vmatpush1.msra.mxu0 0.0
        %424 = vmatprep.subr.mxu0 0.0
        %425 = vmatpush1.msra.mxu0 0.0
        %426 = vmatprep.subr.mxu0 0.0
        %427 = vmatpush1.msra.mxu0 0.0
        %428 = vmatprep.subr.mxu0 0.0
        %429 = vmatpush1.msra.mxu0 0.0
        %430 = vmatprep.subr.mxu0 0.0
        %431 = vmatpush1.msra.mxu0 0.0
        %432 = vmatprep.subr.mxu0 0.0
        %433 = vmatpush1.msra.mxu0 0.0
        %434 = vmatprep.subr.mxu0 0.0
        %435 = vmatpush1.msra.mxu0 0.0
        %436 = vmatprep.subr.mxu0 0.0
        %437 = vmatpush1.msra.mxu0 0.0
        %438 = vmatprep.subr.mxu0 0.0
        %439 = vmatpush1.msra.mxu0 0.0
        %440 = vmatprep.subr.mxu0 0.0
        %441 = vmatpush1.msra.mxu0 0.0
        %442 = vmatprep.subr.mxu0 0.0
        %443 = vmatpush1.msra.mxu0 0.0
        %444 = vmatprep.subr.mxu0 0.0
        %445 = vmatpush1.msra.mxu0 0.0
        %446 = vmatprep.mubr.f32.mxu0 0.0
        %447 = vmatmul.mubr.f32.gmra.mrb[0].mxu0 %v238
        %v448 = vpop.f32.mrb[0].mxu0
        %v449 = vadd.f32 %v234, %v448
        %v450 = vpop.f32.mrb[0].mxu0
        %v451 = vadd.f32 %v234, %v450
        %452 = vdwg.mxu0
        %453 = vmatprep.subr.mxu0 %v197
        %454 = vmatpush1.msra.mxu0 %v196
        %455 = vmatprep.subr.mxu0 %v205
        %456 = vmatpush1.msra.mxu0 %v204
        %457 = vmatprep.subr.mxu0 %v213
        %458 = vmatpush1.msra.mxu0 %v212
        %459 = vmatprep.subr.mxu0 %v221
        %460 = vmatpush1.msra.mxu0 %v220
        %461 = vmatprep.subr.mxu0 %v229
        %462 = vmatpush1.msra.mxu0 %v228
        %463 = vmatprep.subr.mxu0 0.0
        %464 = vmatpush1.msra.mxu0 0.0
        %465 = vmatprep.subr.mxu0 0.0
        %466 = vmatpush1.msra.mxu0 0.0
        %467 = vmatprep.subr.mxu0 0.0
        %468 = vmatpush1.msra.mxu0 0.0
        %469 = vmatprep.subr.mxu0 0.0
        %470 = vmatpush1.msra.mxu0 0.0
        %471 = vmatprep.subr.mxu0 0.0
        %472 = vmatpush1.msra.mxu0 0.0
        %473 = vmatprep.subr.mxu0 0.0
        %474 = vmatpush1.msra.mxu0 0.0
        %475 = vmatprep.subr.mxu0 0.0
        %476 = vmatpush1.msra.mxu0 0.0
        %477 = vmatprep.subr.mxu0 0.0
        %478 = vmatpush1.msra.mxu0 0.0
        %479 = vmatprep.subr.mxu0 0.0
        %480 = vmatpush1.msra.mxu0 0.0
        %481 = vmatprep.subr.mxu0 0.0
        %482 = vmatpush1.msra.mxu0 0.0
        %483 = vmatprep.subr.mxu0 0.0
        %484 = vmatpush1.msra.mxu0 0.0
        %485 = vmatprep.subr.mxu0 0.0
        %486 = vmatpush1.msra.mxu0 0.0
        %487 = vmatprep.subr.mxu0 0.0
        %488 = vmatpush1.msra.mxu0 0.0
        %489 = vmatprep.subr.mxu0 0.0
        %490 = vmatpush1.msra.mxu0 0.0
        %491 = vmatprep.subr.mxu0 0.0
        %492 = vmatpush1.msra.mxu0 0.0
        %493 = vmatprep.subr.mxu0 0.0
        %494 = vmatpush1.msra.mxu0 0.0
        %495 = vmatprep.subr.mxu0 0.0
        %496 = vmatpush1.msra.mxu0 0.0
        %497 = vmatprep.subr.mxu0 0.0
        %498 = vmatpush1.msra.mxu0 0.0
        %499 = vmatprep.subr.mxu0 0.0
        %500 = vmatpush1.msra.mxu0 0.0
        %501 = vmatprep.subr.mxu0 0.0
        %502 = vmatpush1.msra.mxu0 0.0
        %503 = vmatprep.subr.mxu0 0.0
        %504 = vmatpush1.msra.mxu0 0.0
        %505 = vmatprep.subr.mxu0 0.0
        %506 = vmatpush1.msra.mxu0 0.0
        %507 = vmatprep.subr.mxu0 0.0
        %508 = vmatpush1.msra.mxu0 0.0
        %509 = vmatprep.subr.mxu0 0.0
        %510 = vmatpush1.msra.mxu0 0.0
        %511 = vmatprep.subr.mxu0 0.0
        %512 = vmatpush1.msra.mxu0 0.0
        %513 = vmatprep.subr.mxu0 0.0
        %514 = vmatpush1.msra.mxu0 0.0
        %515 = vmatprep.subr.mxu0 0.0
        %516 = vmatpush1.msra.mxu0 0.0
        %517 = vmatprep.mubr.f32.mxu0 0.0
        %518 = vmatmul.mubr.f32.gmra.mrb[0].mxu0 %v238
        %v519 = vpop.f32.mrb[0].mxu0
        %v520 = vadd.f32 %v234, %v519
        %v521 = vpop.f32.mrb[0].mxu0
        %v522 = vadd.f32 %v234, %v521
        %523 = vdwg.mxu0
        %v524 = vadd.f32 %v307, %v309
        %v525 = vadd.f32 %v524, %v378
        %v526 = vadd.f32 %v525, %v380
        %v527 = vadd.f32 %v526, %v449
        %v528 = vadd.f32 %v527, %v451
        %v529 = vadd.f32 %v528, %v520
        %v530 = vadd.f32 %v529, %v522
        %531 = vadd.xlane.f32.xlu0 %v530
        %v532 = vpop.xlane.xlu0 %531
        %v533 = vmul.f32 %v307, %v307
        %v534 = vmul.f32 %v309, %v309
        %v535 = vmul.f32 %v378, %v378
        %v536 = vmul.f32 %v380, %v380
        %v537 = vmul.f32 %v449, %v449
        %v538 = vmul.f32 %v451, %v451
        %v539 = vmul.f32 %v520, %v520
        %v540 = vmul.f32 %v522, %v522
        %v541 = vadd.f32 %v533, %v534
        %v542 = vadd.f32 %v541, %v535
        %v543 = vadd.f32 %v542, %v536
        %v544 = vadd.f32 %v543, %v537
        %v545 = vadd.f32 %v544, %v538
        %v546 = vadd.f32 %v545, %v539
        %v547 = vadd.f32 %v546, %v540
        %548 = vadd.xlane.f32.xlu0 %v547
        %v549 = vpop.xlane.xlu0 %548
        %v550 = vmul.f32 %v532, 0.0009765625
        %v551 = vmul.f32 %v549, 0.0009765625
        %v552 = vmul.f32 %v550, %v550
        %v553 = vsub.f32 %v551, %v552
        %v554 = vsub.f32 %v307, %v550
        %v555 = vsub.f32 %v309, %v550
        %v556 = vsub.f32 %v378, %v550
        %v557 = vsub.f32 %v380, %v550
        %v558 = vsub.f32 %v449, %v550
        %v559 = vsub.f32 %v451, %v550
        %v560 = vsub.f32 %v520, %v550
        %v561 = vsub.f32 %v522, %v550
        %v562 = vadd.f32 %v553, 1e-05
        %v563 = vrsqrt.pop %v562
        %v564 = vmul.f32 %v554, %v563
        %v565 = vmul.f32 %v555, %v563
        %v566 = vmul.f32 %v556, %v563
        %v567 = vmul.f32 %v557, %v563
        %v568 = vmul.f32 %v558, %v563
        %v569 = vmul.f32 %v559, %v563
        %v570 = vmul.f32 %v560, %v563
        %v571 = vmul.f32 %v561, %v563
        %v572 = vmax.f32 %v564, 0.0
        %v573 = vmax.f32 %v565, 0.0
        %v574 = vmax.f32 %v566, 0.0
        %v575 = vmax.f32 %v567, 0.0
        %v576 = vmax.f32 %v568, 0.0
        %v577 = vmax.f32 %v569, 0.0
        %v578 = vmax.f32 %v570, 0.0
        %v579 = vmax.f32 %v571, 0.0
        %580 = vst [vmem:[%s188] sm:$0xff] %v572
        %581 = vst [vmem:[%s188 + $0x8] sm:$0xff] %v573
        %582 = vst [vmem:[%s188 + $0x10] sm:$0xff] %v574
        %583 = vst [vmem:[%s188 + $0x18] sm:$0xff] %v575
        %584 = vst [vmem:[%s188 + $0x20] sm:$0xff] %v576
        %585 = vst [vmem:[%s188 + $0x28] sm:$0xff] %v577
        %586 = vst [vmem:[%s188 + $0x30] sm:$0xff] %v578
        %587 = vst [vmem:[%s188 + $0x38] sm:$0xff] %v579
        %s588 = sand.u32 %s96, 1
        %s589 = scalar_lea.sflag [#allocation4], %s588
        %s590 = sand.u32 %s96, 1
        %s591 = smul.addr %s590, 64
        %s592 = scalar_lea.vmem [#allocation5], %s591
        // Predicated region
        $region37: #{tpu_custom_call.1} parent=31 // pred_check
          %p593 = pneg %p106
        $region38: #{tpu_custom_call.1} parent=31 // pred_check_branch
          %595 = sbr.rel (%p593) target = $region40
        $region39: #{tpu_custom_call.1} parent=31 // pred_region
          %s597 = ssub.s32 1024, 1024
          %598 = vsyncadd %s589, %s597
          %s599 = smul.addr %s20, 8
          %s600 = smul.addr %s599, 128
          %s601 = scalar_lea.hbm %s3, %s600
          %s603 = sshll.u32 %s592, 4
          %s604 = int_to_ptr.vmem [resolvable:$true] %s603
          %606 = dma.vmem_to_hbm [thread:$0]  %s604, 1024, %s601, %s589
        $region40: #{tpu_custom_call.1} parent=31 // pred_fallthru
          _
      $region32: #{tpu_custom_call.1} parent=5 // pred_fallthru
        _
      %p607 = scmp.le.s32.totalorder 2, %s15
      // Predicated region
      $region41: #{tpu_custom_call.1} parent=5 // pred_check
        %p608 = pneg %p607
      $region42: #{tpu_custom_call.1} parent=5 // pred_check_branch
        %610 = sbr.rel (%p608) target = $region44
      $region43: #{tpu_custom_call.1} parent=5 // pred_region
        %s611 = ssub.s32 %s15, 2
        // Predicated region
        $region45: #{tpu_custom_call.1} parent=43 // pred_check
          %p612 = pneg %p112
        $region46: #{tpu_custom_call.1} parent=43 // pred_check_branch
          %614 = sbr.rel (%p612) target = $region48
        $region47: #{tpu_custom_call.1} parent=43 // pred_region
          %s615 = sand.u32 %s97, 1
          %s616 = scalar_lea.sflag [#allocation4], %s615
          %s617 = sand.u32 %s97, 1
          %s618 = smul.addr %s617, 64
          %s619 = scalar_lea.vmem [#allocation5], %s618
          %620 = dma.done %s616, 1024
        $region48: #{tpu_custom_call.1} parent=43 // pred_fallthru
          _
      $region44: #{tpu_custom_call.1} parent=5 // pred_fallthru
        _
    $region6: #{tpu_custom_call.1} parent=1 // loop_footer
      %s19 = sadd.s32 1, %s15
    $region7: #{tpu_custom_call.1} parent=1 // loop_footer_branch
      %14 = sbr.rel target = $region3
    $region8: #{tpu_custom_call.1} parent=1 // loop_exit
      _
    %621 = vsyncpa [#allocation3], 1
    %s622 = scalar_lea.sflag [#allocation3], 1
    %623 = vsyncpa %s622, 1
    %624 = vsyncpa [#allocation4], 1
    %s625 = scalar_lea.sflag [#allocation4], 1
    %626 = vsyncpa %s625, 1

</llo_original>
